<compile_context>
chip_gen: v7x
topology: tpu7x:2x2x1
jax: 0.10.0
libtpu: 0.0.40
codegen_flags: <defaults>
</compile_context>

<pallas_src>
import functools

import jax
import jax.numpy as jnp
from jax.experimental import pallas as pl
from jax.experimental.pallas import tpu as pltpu


def _mixup_ce_kernel(logits_ref, tgt_ref, slam_ref, out_ref, *, n):
    """One batch tile: out[p] += sum_rows( N*lse - (Slam*x[t1] + (N-Slam)*x[t2]) )."""
    p = pl.program_id(0)          # partition axis ("parallel", megacore on v7x)
    i = pl.program_id(1)          # batch-tile axis within partition ("arbitrary")

    @pl.when(i == 0)
    def _():
        out_ref[...] = jnp.zeros_like(out_ref)

    tb, c = logits_ref.shape
    tile = p * pl.num_programs(1) + i                            # logical tile index
    row = jax.lax.broadcasted_iota(jnp.int32, (tb, 1), 0) + tile * tb
    valid = row < n                                              # (tb,1) bool

    # Mask the logits themselves (not only the contribution): rows past N come from
    # a partial / clamped block and may hold garbage; exp(garbage) could be Inf/NaN
    # and 0*NaN would poison the accumulator.
    logits = jnp.where(valid, logits_ref[...].astype(jnp.float32), 0.0)

    # Numerically stable per-row logsumexp (exp on the EUP, reductions on the XLU).
    m = jnp.max(logits, axis=-1, keepdims=True)                  # (tb,1)
    lse = m + jnp.log(jnp.sum(jnp.exp(logits - m), axis=-1, keepdims=True))

    # Fused weighted one-hot pick:  Slam * x[t1] + (N - Slam) * x[t2]
    # (one select pass + one lane reduction).
    # TODO(synk): PyTorch CrossEntropyLoss ignore_index=-100 is not handled; such
    # targets simply match no column here.
    slam = slam_ref[0]                                           # scalar f32, sum(lmpas)
    tgt = tgt_ref[...]                                           # (tb, 2) int32
    t1 = tgt[:, 0:1]
    t2 = tgt[:, 1:2]
    col = jax.lax.broadcasted_iota(jnp.int32, (tb, c), 1)
    w = (jnp.where(col == t1, slam, 0.0)
         + jnp.where(col == t2, jnp.float32(n) - slam, 0.0))
    picked = jnp.sum(w * logits, axis=-1, keepdims=True)         # (tb,1)

    contrib = jnp.where(valid, jnp.float32(n) * lse - picked, 0.0)
    part = jnp.sum(contrib, axis=0, keepdims=True)               # (1,1)

    # Full-tile (unmasked) accumulate into the resident per-partition output block;
    # the scalar partial is replicated across the (8,128) tile, wrapper reads [p,0,0].
    out_ref[...] += jnp.broadcast_to(part[None], out_ref.shape)


def _tpu_vmem_capacity_bytes():
    try:
        return int(pltpu.get_tpu_info().vmem_capacity_bytes)
    except Exception:
        return 64 << 20          # conservative default (v7x per-core VMEM)


def _choose_block_rows(n, c, itemsize, tile_budget_bytes, requested=None):
    """Pick a batch tile: VMEM-budgeted rows, multiple of the dtype sublane pack."""
    pack = max(8, 8 * (4 // max(1, itemsize)))   # f32: 8, bf16: 16, int8: 32
    if requested is not None:
        tb = int(requested)
    else:
        # Double-buffered native-dtype input + ~6 f32-sized in-kernel temporaries.
        per_row = c * (2 * itemsize + 24)
        tb = max(pack, tile_budget_bytes // max(1, per_row))
        tb = min(tb, 32768)
    tb = ((tb + pack - 1) // pack) * pack
    if tb >= n:
        return n, 1                              # single full-array block
    return tb, pl.cdiv(n, tb)


def mixup_loss_multilabel(output, target1, target2=None, lmpas=None, *, block_rows=None):
    """JAX/Pallas equivalent of MixUpLoss_multilabel.forward (default crit)."""
    n, c = output.shape

    if target2 is None:
        # crit(output, target1).mean()  ==  mixup path with lambda == 1.
        target2 = target1
        lmpas = jnp.ones((n,), jnp.float32)
    # TODO(synk): the one-shot `print('using mix up loss!! ', crit)` global side
    # effect has no Pallas equivalent and is omitted.

    itemsize = jnp.dtype(output.dtype).itemsize
    vmem_cap = _tpu_vmem_capacity_bytes()
    if vmem_cap >= (96 << 20):          # v5e / v6e: 128 MiB VMEM per core
        vmem_limit = 64 << 20
        tile_budget = 40 << 20
    else:                               # v7x: 64 MiB VMEM per core
        vmem_limit = 32 << 20
        tile_budget = 16 << 20

    tb, n_tiles = _choose_block_rows(n, c, itemsize, tile_budget, block_rows)

    # Split the batch tiles across (up to) 2 TensorCores (v7x megacore); a 1-TC
    # chip simply runs the partitions back-to-back.
    num_parts = 2 if n_tiles > 1 else 1
    tpp = pl.cdiv(n_tiles, num_parts)
    last_tile = n_tiles - 1

    def tile_map(p_, i_):
        # Clamp so padded logical tiles re-read the last real block; their logical
        # rows are >= n and get masked (and contribute zero) inside the kernel.
        return (jnp.minimum(p_ * tpp + i_, last_tile), 0)

    tgt = jnp.stack(
        [target1.astype(jnp.int32), target2.astype(jnp.int32)], axis=1)   # (n, 2)
    # Only scalar the kernel needs from lmpas after the algebraic collapse.
    slam = jnp.sum(lmpas.astype(jnp.float32)).reshape(1)

    kernel = functools.partial(_mixup_ce_kernel, n=n)
    out = pl.pallas_call(
        kernel,
        out_shape=jax.ShapeDtypeStruct((num_parts, 8, 128), jnp.float32),
        grid=(num_parts, tpp),
        in_specs=[
            pl.BlockSpec((tb, c), tile_map),                      # logits tile (native dtype)
            pl.BlockSpec((tb, 2), tile_map),                      # [target1, target2] tile
            pl.BlockSpec(memory_space=pltpu.MemorySpace.SMEM),    # sum(lmpas) scalar
        ],
        out_specs=pl.BlockSpec((1, 8, 128), lambda p_, i_: (p_, 0, 0)),
        compiler_params=pltpu.CompilerParams(
            dimension_semantics=("parallel", "arbitrary"),
            vmem_limit_bytes=vmem_limit,
        ),
    )(output, tgt, slam)
    # Per-partition partial sums (replicated within each block) -> mean over N*N.
    return jnp.sum(out[:, 0, 0]) * (1.0 / jnp.float32(n * n))


def _reference(output, target1, target2, lmpas):
    """Pure-JAX reference mirroring the PyTorch forward exactly."""
    output = output.astype(jnp.float32)
    lse = jax.nn.logsumexp(output, axis=-1)                      # (N,)
    loss1 = lse - jnp.take_along_axis(output, target1[:, None], axis=1)[:, 0]
    loss2 = lse - jnp.take_along_axis(output, target2[:, None], axis=1)[:, 0]
    lam = lmpas[:, None]                                         # unsqueeze(1)
    return jnp.mean(loss1 * lam + loss2 * (1.0 - lam))           # (N,) vs (N,1) -> (N,N)


if __name__ == "__main__":
    key = jax.random.PRNGKey(0)
    k1, k2, k3, k4 = jax.random.split(key, 4)

    N, C = 8, 32  # batch, num_classes
    output = jax.random.normal(k1, (N, C), dtype=jnp.float32)
    target1 = jax.random.randint(k2, (N,), 0, C, dtype=jnp.int32)
    target2 = jax.random.randint(k3, (N,), 0, C, dtype=jnp.int32)
    lmpas = jax.random.uniform(k4, (N,), dtype=jnp.float32)

    # mixup path (single tile)
    loss = jax.block_until_ready(mixup_loss_multilabel(output, target1, target2, lmpas))
    ref = _reference(output, target1, target2, lmpas)
    assert jnp.allclose(loss, ref, rtol=1e-5, atol=1e-5), (loss, ref)

    # target2 is None path
    loss_single = jax.block_until_ready(mixup_loss_multilabel(output, target1))
    ref_single = _reference(output, target1, target1, jnp.ones((N,), jnp.float32))
    assert jnp.allclose(loss_single, ref_single, rtol=1e-5, atol=1e-5), (loss_single, ref_single)

    # multi-tile, no HBM padding, bf16 logits, partial last block + 2-partition grid
    N2 = 20
    out_bf16 = jax.random.normal(k1, (N2, C), dtype=jnp.bfloat16)
    t1b = jax.random.randint(k2, (N2,), 0, C, dtype=jnp.int32)
    t2b = jax.random.randint(k3, (N2,), 0, C, dtype=jnp.int32)
    lamb = jax.random.uniform(k4, (N2,), dtype=jnp.float32)
    loss_tiled = jax.block_until_ready(
        mixup_loss_multilabel(out_bf16, t1b, t2b, lamb, block_rows=8))
    ref_tiled = _reference(out_bf16.astype(jnp.float32), t1b, t2b, lamb)
    assert jnp.allclose(loss_tiled, ref_tiled, rtol=1e-3, atol=1e-3), (loss_tiled, ref_tiled)

    # f32, many tiles, uneven split across partitions (exercises clamped padded tile)
    N3 = 40
    out3 = jax.random.normal(k4, (N3, C), dtype=jnp.float32)
    t1c = jax.random.randint(k2, (N3,), 0, C, dtype=jnp.int32)
    t2c = jax.random.randint(k3, (N3,), 0, C, dtype=jnp.int32)
    lamc = jax.random.uniform(k1, (N3,), dtype=jnp.float32)
    loss3 = jax.block_until_ready(
        mixup_loss_multilabel(out3, t1c, t2c, lamc, block_rows=8))
    ref3 = _reference(out3, t1c, t2c, lamc)
    assert jnp.allclose(loss3, ref3, rtol=1e-5, atol=1e-5), (loss3, ref3)

    print("KERNEL_OK")
</pallas_src>

<mosaic_0001>
module attributes {stable_mosaic.version = 11 : i64} {
  func.func @_mixup_ce_kernel(%arg0: i32, %arg1: i32, %arg2: memref<8x32xf32, #tpu.memory_space<vmem>>, %arg3: memref<8x2xi32, #tpu.memory_space<vmem>>, %arg4: memref<1xf32, #tpu.memory_space<smem>>, %arg5: memref<1x8x128xf32, #tpu.memory_space<vmem>>) attributes {dimension_semantics = [#tpu.dimension_semantics<parallel>, #tpu.dimension_semantics<arbitrary>], iteration_bounds = array<i64: 1, 1>, scalar_prefetch = 0 : i64, scratch_operands = 0 : i64, tpu.core_type = #tpu.core_type<tc>, window_params = [{transform_indices = @transform_0, window_bounds = array<i64: 8, 32>}, {transform_indices = @transform_1, window_bounds = array<i64: 8, 2>}, {transform_indices = @transform_2, window_bounds = array<i64: 1>}, {transform_indices = @transform_3, window_bounds = array<i64: 1, 8, 128>}]} {
    %c0_i32 = arith.constant 0 : i32
    %0 = arith.cmpi eq, %arg1, %c0_i32 : i32
    %1 = arith.extui %0 : i1 to i32
    %c0_i32_0 = arith.constant 0 : i32
    %2 = arith.cmpi ne, %1, %c0_i32_0 : i32
    scf.if %2 {
      %cst_21 = arith.constant 0.000000e+00 : f32
      %58 = vector.broadcast %cst_21 : f32 to vector<1x8x128xf32>
      %c0_22 = arith.constant 0 : index
      %c0_23 = arith.constant 0 : index
      %c0_24 = arith.constant 0 : index
      %59 = vector.load %arg5[%c0_22, %c0_23, %c0_24] : memref<1x8x128xf32, #tpu.memory_space<vmem>>, vector<1x8x128xf32>
      tpu.vector_store %arg5[%c0_22, %c0_23, %c0_24], %58 {strides = array<i32>} : memref<1x8x128xf32, #tpu.memory_space<vmem>>, vector<1x8x128xf32>,
    } else {
    }
    %c1_i32 = arith.constant 1 : i32
    %3 = arith.muli %arg0, %c1_i32 : i32
    %4 = arith.addi %3, %arg1 : i32
    %5 = tpu.iota {dimensions = array<i32: 0>} : vector<8x1xi32>
    %c8_i32 = arith.constant 8 : i32
    %6 = arith.muli %4, %c8_i32 : i32
    %7 = vector.broadcast %6 : i32 to vector<8x1xi32>
    %8 = arith.addi %5, %7 : vector<8x1xi32>
    %c8_i32_1 = arith.constant 8 : i32
    %9 = vector.broadcast %c8_i32_1 : i32 to vector<8x1xi32>
    %10 = arith.cmpi slt, %8, %9 : vector<8x1xi32>
    %c0 = arith.constant 0 : index
    %c0_2 = arith.constant 0 : index
    %11 = vector.load %arg2[%c0, %c0_2] : memref<8x32xf32, #tpu.memory_space<vmem>>, vector<8x32xf32>
    %cst = arith.constant 0.000000e+00 : f32
    %12 = vector.shape_cast %10 : vector<8x1xi1> to vector<8x1xi1>
    %13 = vector.broadcast %12 : vector<8x1xi1> to vector<8x32xi1>
    %14 = vector.broadcast %cst : f32 to vector<8x32xf32>
    %15 = arith.select %13, %11, %14 : vector<8x32xi1>, vector<8x32xf32>
    %cst_3 = arith.constant dense<0xFF800000> : vector<8xf32>
    %16 = vector.multi_reduction <maximumf>, %15, %cst_3 [1] : vector<8x32xf32> to vector<8xf32>
    %17 = vector.shape_cast %16 : vector<8xf32> to vector<8x1xf32>
    %18 = vector.broadcast %17 : vector<8x1xf32> to vector<8x32xf32>
    %19 = arith.subf %15, %18 : vector<8x32xf32>
    %20 = math.exp %19 : vector<8x32xf32>
    %cst_4 = arith.constant dense<0.000000e+00> : vector<8xf32>
    %21 = vector.multi_reduction <add>, %20, %cst_4 [1] : vector<8x32xf32> to vector<8xf32>
    %22 = vector.shape_cast %21 : vector<8xf32> to vector<8x1xf32>
    %23 = math.log %22 : vector<8x1xf32>
    %24 = arith.addf %17, %23 : vector<8x1xf32>
    %c0_5 = arith.constant 0 : index
    %25 = memref.load %arg4[%c0_5] : memref<1xf32, #tpu.memory_space<smem>>
    %c0_6 = arith.constant 0 : index
    %c0_7 = arith.constant 0 : index
    %26 = vector.load %arg3[%c0_6, %c0_7] : memref<8x2xi32, #tpu.memory_space<vmem>>, vector<8x2xi32>
    %27 = vector.extract_strided_slice %26 {offsets = [0, 0], sizes = [8, 1], strides = [1, 1]} : vector<8x2xi32> to vector<8x1xi32>
    %28 = vector.extract_strided_slice %26 {offsets = [0, 1], sizes = [8, 1], strides = [1, 1]} : vector<8x2xi32> to vector<8x1xi32>
    %29 = tpu.iota {dimensions = array<i32: 1>} : vector<8x32xi32>
    %30 = vector.broadcast %27 : vector<8x1xi32> to vector<8x32xi32>
    %31 = arith.cmpi eq, %29, %30 : vector<8x32xi32>
    %cst_8 = arith.constant 0.000000e+00 : f32
    %32 = vector.broadcast %25 : f32 to vector<8x32xf32>
    %33 = vector.broadcast %cst_8 : f32 to vector<8x32xf32>
    %34 = arith.select %31, %32, %33 : vector<8x32xi1>, vector<8x32xf32>
    %35 = vector.broadcast %28 : vector<8x1xi32> to vector<8x32xi32>
    %36 = arith.cmpi eq, %29, %35 : vector<8x32xi32>
    %cst_9 = arith.constant 8.000000e+00 : f32
    %37 = arith.subf %cst_9, %25 : f32
    %cst_10 = arith.constant 0.000000e+00 : f32
    %38 = vector.broadcast %37 : f32 to vector<8x32xf32>
    %39 = vector.broadcast %cst_10 : f32 to vector<8x32xf32>
    %40 = arith.select %36, %38, %39 : vector<8x32xi1>, vector<8x32xf32>
    %41 = arith.addf %34, %40 : vector<8x32xf32>
    %42 = arith.mulf %41, %15 : vector<8x32xf32>
    %cst_11 = arith.constant dense<0.000000e+00> : vector<8xf32>
    %43 = vector.multi_reduction <add>, %42, %cst_11 [1] : vector<8x32xf32> to vector<8xf32>
    %44 = vector.shape_cast %43 : vector<8xf32> to vector<8x1xf32>
    %cst_12 = arith.constant 8.000000e+00 : f32
    %45 = vector.broadcast %cst_12 : f32 to vector<8x1xf32>
    %46 = arith.mulf %45, %24 : vector<8x1xf32>
    %47 = arith.subf %46, %44 : vector<8x1xf32>
    %cst_13 = arith.constant 0.000000e+00 : f32
    %48 = vector.broadcast %cst_13 : f32 to vector<8x1xf32>
    %49 = arith.select %10, %47, %48 : vector<8x1xi1>, vector<8x1xf32>
    %cst_14 = arith.constant dense<0.000000e+00> : vector<1xf32>
    %50 = vector.multi_reduction <add>, %49, %cst_14 [0] : vector<8x1xf32> to vector<1xf32>
    %51 = vector.shape_cast %50 : vector<1xf32> to vector<1x1xf32>
    %c0_15 = arith.constant 0 : index
    %c0_16 = arith.constant 0 : index
    %c0_17 = arith.constant 0 : index
    %52 = vector.load %arg5[%c0_15, %c0_16, %c0_17] : memref<1x8x128xf32, #tpu.memory_space<vmem>>, vector<1x8x128xf32>
    %53 = vector.shape_cast %51 : vector<1x1xf32> to vector<1x1x1xf32>
    %54 = vector.shape_cast %53 : vector<1x1x1xf32> to vector<1x1x1xf32>
    %55 = vector.broadcast %54 : vector<1x1x1xf32> to vector<1x8x128xf32>
    %56 = arith.addf %52, %55 : vector<1x8x128xf32>
    %c0_18 = arith.constant 0 : index
    %c0_19 = arith.constant 0 : index
    %c0_20 = arith.constant 0 : index
    %57 = vector.load %arg5[%c0_18, %c0_19, %c0_20] : memref<1x8x128xf32, #tpu.memory_space<vmem>>, vector<1x8x128xf32>
    tpu.vector_store %arg5[%c0_18, %c0_19, %c0_20], %56 {strides = array<i32>} : memref<1x8x128xf32, #tpu.memory_space<vmem>>, vector<1x8x128xf32>,
    return
  }
  func.func @transform_0(%arg0: i32, %arg1: i32) -> (i32, i32) {
    %c1_i32 = arith.constant 1 : i32
    %0 = arith.muli %arg0, %c1_i32 : i32
    %1 = arith.addi %0, %arg1 : i32
    %c0_i32 = arith.constant 0 : i32
    %2 = arith.minsi %1, %c0_i32 : i32
    %c0_i32_0 = arith.constant 0 : i32
    %c0_i32_1 = arith.constant 0 : i32
    return %2, %c0_i32_0 : i32, i32
  }
  func.func @transform_1(%arg0: i32, %arg1: i32) -> (i32, i32) {
    %c1_i32 = arith.constant 1 : i32
    %0 = arith.muli %arg0, %c1_i32 : i32
    %1 = arith.addi %0, %arg1 : i32
    %c0_i32 = arith.constant 0 : i32
    %2 = arith.minsi %1, %c0_i32 : i32
    %c0_i32_0 = arith.constant 0 : i32
    %c0_i32_1 = arith.constant 0 : i32
    return %2, %c0_i32_0 : i32, i32
  }
  func.func @transform_2(%arg0: i32, %arg1: i32) -> i32 {
    %c0_i32 = arith.constant 0 : i32
    %c0_i32_0 = arith.constant 0 : i32
    return %c0_i32 : i32
  }
  func.func @transform_3(%arg0: i32, %arg1: i32) -> (i32, i32, i32) {
    %c0_i32 = arith.constant 0 : i32
    %c0_i32_0 = arith.constant 0 : i32
    %c0_i32_1 = arith.constant 0 : i32
    return %arg0, %c0_i32, %c0_i32_0 : i32, i32, i32
  }
}

</mosaic_0001>

<llo_original>
// kernel: tpu_custom_call.1
$region0: #{tpu_custom_call.1}
  #allocation0 [shape = 'u32[]', space=smem, size = 0x4, offset = 0x4, fixed_abs, tag = 'smem constant byte address 0x4 - core index']
  #allocation1 [shape = 'u32[144,128]{1,0:T(1,128)}', space=vmem, size = 0x12000, scoped, tag = 'internal scratch']
  #allocation2 [shape = 'f32[1]{0:T(128)S(6)}', space=smem, size = 0x200, scoped, tag = 'scoped memory for tpu_custom_call.1']
  %s0 = inlined_call_operand.vmem [shape: f32[8,32], index: 0, kind: input, shape index: {}]
  %s1 = inlined_call_operand.vmem [shape: s32[8,2], index: 1, kind: input, shape index: {}]
  %s2 = inlined_call_operand.<no memory space> [shape: f32[1], index: 2, kind: input, shape index: {}]
  %s3 = inlined_call_operand.hbm [shape: f32[1,8,128], index: 3, kind: output, shape index: {}]
  %s4 = sld [smem:[#allocation0]]
  $region26: #{tpu_custom_call.1} parent=0
    _
  %s6 = ssub.s32 1, %s4
  %s7 = scalar_select 0, %s6, %s4
  %8 = sst [smem:[#allocation2]] %s2
  $region1: #{tpu_custom_call.1} parent=0
    #allocation3 [shape = 'u8[4096]{0}', space=vmem, size = 0x1000, scoped, tag = 'output window, operand 0, single buffered']
    #allocation4 [shape = 's32[1]{0}', space=sflag, size = 0x4, scoped, tag = 'scoped memory for tpu_custom_call.1']
    %9 = vsyncpa [#allocation4], 0
    // Predicated region
    $region2: #{tpu_custom_call.1} parent=1 // pred_check
      _
    $region3: #{tpu_custom_call.1} parent=1 // pred_check_branch
      %11 = sbr.rel (0) target = $region5
    $region4: #{tpu_custom_call.1} parent=1 // pred_region
      %s12 = sadd.s32 0, 0
      %p13 = scmp.lt.s32.totalorder %s12, 0
      %s14 = scalar_select %p13, %s12, 0
      %p15 = scmp.lt.s32.totalorder %s14, 0
      %s16 = scalar_select %p15, %s14, 0
      %s17 = smul.addr %s16, 8
      %s18 = scalar_lea.vmem %s0, %s17
      %s19 = sadd.s32 0, 0
      %p20 = scmp.lt.s32.totalorder %s19, 0
      %s21 = scalar_select %p20, %s19, 0
    $region5: #{tpu_custom_call.1} parent=1 // pred_fallthru
      _
    // Predicated region
    $region6: #{tpu_custom_call.1} parent=1 // pred_check
      _
    $region7: #{tpu_custom_call.1} parent=1 // pred_check_branch
      %23 = sbr.rel (0) target = $region9
    $region8: #{tpu_custom_call.1} parent=1 // pred_region
      %s24 = sadd.s32 0, 0
      %p25 = scmp.lt.s32.totalorder %s24, 0
      %s26 = scalar_select %p25, %s24, 0
      %p27 = scmp.lt.s32.totalorder %s26, 0
      %s28 = scalar_select %p27, %s26, 0
      %s29 = smul.addr %s28, 8
      %s30 = scalar_lea.vmem %s1, %s29
      %s31 = sadd.s32 0, 0
      %p32 = scmp.lt.s32.totalorder %s31, 0
      %s33 = scalar_select %p32, %s31, 0
    $region9: #{tpu_custom_call.1} parent=1 // pred_fallthru
      _
    // Predicated region
    $region10: #{tpu_custom_call.1} parent=1 // pred_check
      _
    $region11: #{tpu_custom_call.1} parent=1 // pred_check_branch
      %35 = sbr.rel (0) target = $region13
    $region12: #{tpu_custom_call.1} parent=1 // pred_region
      _
    $region13: #{tpu_custom_call.1} parent=1 // pred_fallthru
      _
    %s36 = sadd.s32 0, 0
    %p37 = scmp.lt.s32.totalorder %s36, 0
    %s38 = scalar_select %p37, %s36, 0
    %p39 = scmp.lt.s32.totalorder %s38, 0
    %s40 = scalar_select %p39, %s38, 0
    %s41 = smul.addr %s40, 8
    %s42 = scalar_lea.vmem %s0, %s41
    %s43 = sadd.s32 0, 0
    %p44 = scmp.lt.s32.totalorder %s43, 0
    %s45 = scalar_select %p44, %s43, 0
    %p46 = scmp.lt.s32.totalorder %s45, 0
    %s47 = scalar_select %p46, %s45, 0
    %s48 = smul.addr %s47, 8
    %s49 = scalar_lea.vmem %s1, %s48
    %s50 = sadd.s32 0, 0
    %p51 = scmp.lt.s32.totalorder %s50, 0
    %s52 = scalar_select %p51, %s50, 0
    %p53 = scmp.lt.s32.totalorder %s52, 0
    %s54 = scalar_select %p53, %s52, 0
    %s55 = smul.addr %s54, 8
    %s56 = scalar_lea.vmem %s0, %s55
    %s57 = sadd.s32 0, 0
    %p58 = scmp.lt.s32.totalorder %s57, 0
    %s59 = scalar_select %p58, %s57, 0
    %s60 = sadd.s32 0, 0
    %p61 = scmp.lt.s32.totalorder %s60, 0
    %s62 = scalar_select %p61, %s60, 0
    %p63 = scmp.lt.s32.totalorder %s62, 0
    %s64 = scalar_select %p63, %s62, 0
    %s65 = smul.addr %s64, 8
    %s66 = scalar_lea.vmem %s1, %s65
    %s67 = sadd.s32 0, 0
    %p68 = scmp.lt.s32.totalorder %s67, 0
    %s69 = scalar_select %p68, %s67, 0
    %p70 = scmp.eq.s32.totalorder 0, 0
    // Predicated region
    $region14: #{tpu_custom_call.1} parent=1 // pred_check
      %p71 = pneg %p70
    $region15: #{tpu_custom_call.1} parent=1 // pred_check_branch
      %73 = sbr.rel (%p71) target = $region17
    $region16: #{tpu_custom_call.1} parent=1 // pred_region
      %74 = vst [vmem:[#allocation3] sm:$0xff] 0.0
    $region17: #{tpu_custom_call.1} parent=1 // pred_fallthru
      _
    %s75 = sadd.s32 0, 0
    %v76 = vlaneseq
    %v77 = vshrl.u32 %v76, 7
    %s78 = smul.u32 %s75, 8
    %v79 = vstv %s78
    %v80 = vadd.s32 %v77, %v79
    %vm81 = vcmp.lt.s32.totalorder %v80, 8
    %v82 = vld [vmem:[%s56] sm:$0xff]
    %v83 = vsel %vm81, 1, 0
    %vm84 = vcmp.eq.s32.totalorder %v83, 1
    %v85 = vsel %vm84, %v82, 0.0
    %vm86 = vcmask 261120
    %v87 = vsel %vm86, %v85, -inf
    %88 = vmax.xlane.f32.xlu0 %v87
    %v89 = vpop.xlane.xlu0 %88
    %v90 = vsub.f32 %v85, %v89
    %v91 = vmul.f32 %v90, 1.442695
    %v92 = vpow.pop %v91
    %v93 = vsel %vm86, %v92, 0.0
    %94 = vadd.xlane.f32.xlu0 %v93
    %v95 = vpop.xlane.xlu0 %94
    %v96 = vlog2.pop %v95
    %v97 = vmul.f32 %v96, 0.6931472
    %v98 = vadd.f32 %v89, %v97
    %s99 = sld [smem:[#allocation2]]
    %v100 = vld [vmem:[%s66] sm:$0xff]
    %v101 = vlaneseq
    %v102 = vand.u32 %v101, 127
    %103 = vset.pattern.permute.xlu0 0
    %104 = vperm.xlu0 %103, %v100
    %v105 = vpop.permute.xlu0 %104
    %vm106 = vcmp.eq.s32.totalorder %v102, %v105
    %v107 = vstv %s99
    %v108 = vsel %vm106, %v107, 0.0
    %109 = vset.pattern.permute.xlu0 1
    %110 = vperm.xlu0 %109, %v100
    %v111 = vpop.permute.xlu0 %110
    %vm112 = vcmp.eq.s32.totalorder %v102, %v111
    %s113 = ssub.f32 8.0, %s99
    %v114 = vstv %s113
    %v115 = vsel %vm112, %v114, 0.0
    %v116 = vadd.f32 %v108, %v115
    %v117 = vmul.f32 %v116, %v85
    %v118 = vsel %vm86, %v117, 0.0
    %119 = vadd.xlane.f32.xlu0 %v118
    %v120 = vpop.xlane.xlu0 %119
    %v121 = vmul.f32 %v98, 8.0
    %v122 = vsub.f32 %v121, %v120
    %v123 = vsel %vm81, %v122, 0.0
    %v124 = vrot.slane %v123, 4
    %v125 = vadd.f32 %v123, %v124
    %v126 = vrot.slane %v125, 2
    %v127 = vadd.f32 %v125, %v126
    %v128 = vrot.slane %v127, 1
    %v129 = vadd.f32 %v127, %v128
    %v130 = vld [vmem:[#allocation3] sm:$0xff]
    %v131 = vadd.f32 %v130, %v129
    %132 = vst [vmem:[#allocation3] sm:$0xff] %v131
    // Predicated region
    $region18: #{tpu_custom_call.1} parent=1 // pred_check
      _
    $region19: #{tpu_custom_call.1} parent=1 // pred_check_branch
      %134 = sbr.rel (0) target = $region21
    $region20: #{tpu_custom_call.1} parent=1 // pred_region
      %s136 = ssub.s32 128, 128
      %137 = vsyncadd [#allocation4], %s136
      %s139 = sshll.u32 [#allocation3], 4
      %s140 = int_to_ptr.vmem [resolvable:$true] %s139
      %142 = dma.vmem_to_hbm [thread:$0]  %s140, 128, %s3, [#allocation4]
    $region21: #{tpu_custom_call.1} parent=1 // pred_fallthru
      _
    // Predicated region
    $region22: #{tpu_custom_call.1} parent=1 // pred_check
      _
    $region23: #{tpu_custom_call.1} parent=1 // pred_check_branch
      %144 = sbr.rel (0) target = $region25
    $region24: #{tpu_custom_call.1} parent=1 // pred_region
      %145 = dma.done [#allocation4], 128
    $region25: #{tpu_custom_call.1} parent=1 // pred_fallthru
      _
    %146 = vsyncpa [#allocation4], 1

</llo_original>
